<compile_context>
chip_gen: v5e
topology: v5e:2x2
jax: 0.10.0
libtpu: 0.0.40
codegen_flags: <defaults>
</compile_context>

<pallas_src>
import functools

import jax
import jax.numpy as jnp
from jax import lax
from jax.experimental import pallas as pl
from jax.experimental.pallas import tpu as pltpu

# Above v5e's 16 MiB default scoped VMEM, comfortably under every chip's physical VMEM.
VMEM_LIMIT_BYTES = 32 * 1024 * 1024


def conv2d_size_out(size, kernel, stride, padding=0):
    return (size - kernel + 2 * padding) // stride + 1


# ---------------------------------------------------------------------------
# Pallas kernels
# ---------------------------------------------------------------------------

def gemm_bias_act_kernel(x_ref, w_ref, b_ref, o_ref, *, relu):
    """o = act(x @ w + b).  x:[TM,K] bf16 streamed over M; w:[K,N] bf16 and b:[1,N] f32
    VMEM-resident (index_map -> block (0,0) on every grid step).  f32 accumulation."""
    acc = jnp.dot(x_ref[...], w_ref[...], preferred_element_type=jnp.float32)
    acc = acc + b_ref[...]
    if relu:
        acc = jnp.maximum(acc, 0.0)
    o_ref[...] = acc.astype(o_ref.dtype)


def head_kernel(f_ref, w0_ref, b0_ref, w1_ref, b1_ref, wv_ref, bv_ref,
                pol_ref, val_ref):
    """Fused FC head for one TM-row batch tile:
         h        = relu(f @ W0 + b0)                 (f32 accumulation)
         policies = softmax(h @ W1 + b1, axis=-1)     (f32 softmax, approx reciprocal)
         values   = sum(h * wv, -1) + bv              (f32 lane reduction)
    """
    h = jnp.dot(f_ref[...], w0_ref[...], preferred_element_type=jnp.float32)
    h = jnp.maximum(h + b0_ref[...], 0.0)
    hb = h.astype(jnp.bfloat16)

    logits = jnp.dot(hb, w1_ref[...], preferred_element_type=jnp.float32) + b1_ref[...]
    m = jnp.max(logits, axis=-1, keepdims=True)
    e = jnp.exp(logits - m)
    inv = pl.reciprocal(jnp.sum(e, axis=-1, keepdims=True), approx=True)
    pol_ref[...] = (e * inv).astype(pol_ref.dtype)

    val_ref[...] = (jnp.sum(h * wv_ref[...], axis=-1, keepdims=True)
                    + bv_ref[...]).astype(val_ref.dtype)


# ---------------------------------------------------------------------------
# Pallas wrappers
# ---------------------------------------------------------------------------

def pallas_gemm_bias_act(x, w, b, *, relu, tm=512):
    """x:[M,K] bf16, w:[K,N] bf16, b:[1,N] f32 -> [M,N] (x.dtype).  No operand padding:
    K and N blocks cover the full array dims; M tiled with a masked boundary block."""
    M, K = x.shape
    _, N = w.shape
    TM = min(tm, M)
    return pl.pallas_call(
        functools.partial(gemm_bias_act_kernel, relu=relu),
        out_shape=jax.ShapeDtypeStruct((M, N), x.dtype),
        grid=(pl.cdiv(M, TM),),
        in_specs=[
            pl.BlockSpec((TM, K), lambda i: (i, 0)),   # activations: streamed over M
            pl.BlockSpec((K, N), lambda i: (0, 0)),    # weights: VMEM-resident
            pl.BlockSpec((1, N), lambda i: (0, 0)),    # bias: VMEM-resident
        ],
        out_specs=pl.BlockSpec((TM, N), lambda i: (i, 0)),
        compiler_params=pltpu.CompilerParams(
            dimension_semantics=("parallel",),
            vmem_limit_bytes=VMEM_LIMIT_BYTES),
    )(x, w, b)


def pallas_head(f, w0, b0, w1, b1, wv, bv, *, tm=512):
    """Fused FC head gridded over batch rows; all weights/biases VMEM-resident."""
    B, K = f.shape
    FC = w0.shape[1]
    A = w1.shape[1]
    TM = min(tm, B)
    return pl.pallas_call(
        head_kernel,
        out_shape=(jax.ShapeDtypeStruct((B, A), jnp.float32),
                   jax.ShapeDtypeStruct((B, 1), jnp.float32)),
        grid=(pl.cdiv(B, TM),),
        in_specs=[
            pl.BlockSpec((TM, K), lambda i: (i, 0)),   # flattened conv features
            pl.BlockSpec((K, FC), lambda i: (0, 0)),   # linear_p_0 weight
            pl.BlockSpec((1, FC), lambda i: (0, 0)),   # linear_p_0 bias
            pl.BlockSpec((FC, A), lambda i: (0, 0)),   # linear_p_1 weight
            pl.BlockSpec((1, A), lambda i: (0, 0)),    # linear_p_1 bias
            pl.BlockSpec((1, FC), lambda i: (0, 0)),   # linear_v weight (row)
            pl.BlockSpec((1, 1), lambda i: (0, 0)),    # linear_v bias
        ],
        out_specs=(pl.BlockSpec((TM, A), lambda i: (i, 0)),
                   pl.BlockSpec((TM, 1), lambda i: (i, 0))),
        compiler_params=pltpu.CompilerParams(
            dimension_semantics=("parallel",),
            vmem_limit_bytes=VMEM_LIMIT_BYTES),
    )(f, w0, b0, w1, b1, wv, bv)


def make_atari_forward(cfg):
    k_sizes = [kk[0] for kk in cfg['kernels']]
    strides = cfg['strides']

    def conv_layer(x, w_mat, b_row, k, s):
        """x: [B,H,W,C] bf16 NHWC -> [B,OH,OW,Cout] bf16 via im2col + Pallas GEMM."""
        B, H, W, C = x.shape
        oh = (H - k) // s + 1
        ow = (W - k) // s + 1
        # TODO(synk): the strided patch gather (pure data rearrangement) stays in XLA;
        # an in-kernel version would need strided sublane loads / manual DMA.
        cols = [x[:, kh:kh + (oh - 1) * s + 1:s, kw:kw + (ow - 1) * s + 1:s, :]
                for kh in range(k) for kw in range(k)]
        patches = jnp.concatenate(cols, axis=-1).reshape(B * oh * ow, k * k * C)
        out = pallas_gemm_bias_act(patches, w_mat, b_row, relu=True)
        return out.reshape(B, oh, ow, w_mat.shape[1])     # exact Cout, no slicing

    @jax.jit
    def forward(x_nchw, prep):
        (w0m, b0r, w1m, b1r, w2m, b2r, wp0m, bp0r, wp1m, bp1r, wv_row, bvr) = prep
        x = jnp.transpose(x_nchw, (0, 2, 3, 1)).astype(jnp.bfloat16)   # NCHW -> NHWC
        h = conv_layer(x, w0m, b0r, k_sizes[0], strides[0])
        h = conv_layer(h, w1m, b1r, k_sizes[1], strides[1])
        h = conv_layer(h, w2m, b2r, k_sizes[2], strides[2])
        B = h.shape[0]
        f = h.reshape(B, -1)      # (h,w,c) order; linear_p_0 weight rows permuted to match
        return pallas_head(f, wp0m, bp0r, wp1m, bp1r, wv_row, bvr)

    return forward


# ---------------------------------------------------------------------------
# Parameter construction (PyTorch layouts) and Pallas GEMM layouts
# ---------------------------------------------------------------------------

def init_params(key, cfg):
    """Deterministic init mimicking torch.nn.{Conv2d,Linear} U(-1/sqrt(fan_in), +1/sqrt(fan_in)),
    stored in PyTorch layouts (conv: [Cout,Cin,kh,kw]; linear: [out,in])."""
    planes = cfg['planes']
    f, k, s = cfg['filters'], cfg['kernels'], cfg['strides']
    a_dim, fc = cfg['action_dim'], cfg['fully_connected']
    s0 = conv2d_size_out(cfg['img_side'], k[0][0], s[0])
    s1 = conv2d_size_out(s0, k[1][0], s[1])
    s2 = conv2d_size_out(s1, k[2][0], s[2])
    lin_in = f[2] * s2 * s2
    keys = jax.random.split(key, 12)

    def u(kk, shape, fan_in):
        bound = 1.0 / (fan_in ** 0.5)
        return jax.random.uniform(kk, shape, jnp.float32, -bound, bound)

    w0 = u(keys[0], (f[0], planes, k[0][0], k[0][1]), planes * k[0][0] * k[0][1])
    b0 = u(keys[1], (f[0],), planes * k[0][0] * k[0][1])
    w1 = u(keys[2], (f[1], f[0], k[1][0], k[1][1]), f[0] * k[1][0] * k[1][1])
    b1 = u(keys[3], (f[1],), f[0] * k[1][0] * k[1][1])
    w2 = u(keys[4], (f[2], f[1], k[2][0], k[2][1]), f[1] * k[2][0] * k[2][1])
    b2 = u(keys[5], (f[2],), f[1] * k[2][0] * k[2][1])
    wp0 = u(keys[6], (fc, lin_in), lin_in)
    bp0 = u(keys[7], (fc,), lin_in)
    wp1 = u(keys[8], (a_dim, fc), fc)
    bp1 = u(keys[9], (a_dim,), fc)
    wv = u(keys[10], (1, fc), fc)
    bv = u(keys[11], (1,), fc)
    return (w0, b0, w1, b1, w2, b2, wp0, bp0, wp1, bp1, wv, bv)


def prepare_params(raw, cfg):
    """Permute to im2col-GEMM layouts; matmul weights stored in bf16 (MXU operand dtype),
    biases as f32 rows.  No padding anywhere -> no padded writeback, no slices."""
    (w0, b0, w1, b1, w2, b2, wp0, bp0, wp1, bp1, wv, bv) = raw
    k, s = cfg['kernels'], cfg['strides']
    s0 = conv2d_size_out(cfg['img_side'], k[0][0], s[0])
    s1 = conv2d_size_out(s0, k[1][0], s[1])
    s2 = conv2d_size_out(s1, k[2][0], s[2])
    c2, fc = cfg['filters'][2], cfg['fully_connected']

    def conv_mat(w):   # [Cout,Cin,kh,kw] -> [(kh,kw,ci)-ordered K, Cout] bf16
        co, ci, kh, kw = w.shape
        return jnp.transpose(w, (2, 3, 1, 0)).reshape(kh * kw * ci, co).astype(jnp.bfloat16)

    def bias_row(b):
        return b.reshape(1, -1).astype(jnp.float32)

    # linear_p_0: PyTorch weight [FC, C2*S2*S2] expects (c,h,w) flatten order; our conv
    # output flattens as (h,w,c) -> permute the input-feature axis, transpose, cast bf16.
    wp0_hwc = jnp.transpose(wp0.reshape(fc, c2, s2, s2), (0, 2, 3, 1)).reshape(fc, s2 * s2 * c2)

    return (conv_mat(w0), bias_row(b0),
            conv_mat(w1), bias_row(b1),
            conv_mat(w2), bias_row(b2),
            wp0_hwc.T.astype(jnp.bfloat16), bias_row(bp0),
            wp1.T.astype(jnp.bfloat16), bias_row(bp1),
            wv.astype(jnp.float32).reshape(1, -1), bias_row(bv))


def reference_forward(x_nchw, raw, cfg):
    """Pure-JAX, PyTorch-faithful reference (NCHW convs, NCHW flatten) using the same
    bf16-operand / f32-accumulation numerics as the Pallas pipeline."""
    (w0, b0, w1, b1, w2, b2, wp0, bp0, wp1, bp1, wv, bv) = raw
    bf = jnp.bfloat16

    def conv(x, w, b, s):
        y = lax.conv_general_dilated(
            x.astype(bf), w.astype(bf), window_strides=(s, s), padding='VALID',
            dimension_numbers=('NCHW', 'OIHW', 'NCHW'),
            preferred_element_type=jnp.float32)
        return y + b[None, :, None, None]

    h = jax.nn.relu(conv(x_nchw, w0, b0, cfg['strides'][0]))
    h = jax.nn.relu(conv(h, w1, b1, cfg['strides'][1]))
    h = jax.nn.relu(conv(h, w2, b2, cfg['strides'][2]))
    h = h.reshape(h.shape[0], -1)                         # torch .view => (c,h,w) order
    h = jax.nn.relu(jnp.dot(h.astype(bf), wp0.T.astype(bf),
                            preferred_element_type=jnp.float32) + bp0)
    policies = jax.nn.softmax(jnp.dot(h.astype(bf), wp1.T.astype(bf),
                                      preferred_element_type=jnp.float32) + bp1, axis=-1)
    values = jnp.dot(h, wv.T, precision=lax.Precision.HIGHEST) + bv   # value head in f32
    return policies, values


if __name__ == "__main__":
    # Small config consistent with the module (same structure as the 84x84 Atari default).
    cfg = dict(
        planes=4, img_side=20,
        filters=[8, 16, 16], kernels=[(4, 4), (3, 3), (3, 3)], strides=[2, 2, 1],
        fully_connected=32, action_dim=6,
    )
    batch = 2
    key = jax.random.PRNGKey(0)
    kx, kp = jax.random.split(key)
    x = jax.random.normal(kx, (batch, cfg['planes'], cfg['img_side'], cfg['img_side']),
                          dtype=jnp.float32)
    raw = init_params(kp, cfg)
    prep = prepare_params(raw, cfg)

    forward = make_atari_forward(cfg)
    policies, values = forward(x, prep)
    jax.block_until_ready((policies, values))

    pol_ref, val_ref = reference_forward(x, raw, cfg)
    assert policies.shape == (batch, cfg['action_dim']) and values.shape == (batch, 1)
    assert jnp.allclose(jnp.sum(policies, axis=-1), 1.0, atol=2e-2)
    assert jnp.allclose(policies, pol_ref, atol=2e-2, rtol=2e-2)
    assert jnp.allclose(values, val_ref, atol=5e-3, rtol=5e-3)

    print("KERNEL_OK")
</pallas_src>

<mosaic_0001>
module attributes {stable_mosaic.version = 11 : i64} {
  func.func @gemm_bias_act_kernel(%arg0: i32, %arg1: memref<162x64xbf16, #tpu.memory_space<vmem>>, %arg2: memref<64x8xbf16, #tpu.memory_space<vmem>>, %arg3: memref<1x8xf32, #tpu.memory_space<vmem>>, %arg4: memref<162x8xbf16, #tpu.memory_space<vmem>>) attributes {dimension_semantics = [#tpu.dimension_semantics<parallel>], iteration_bounds = array<i64: 1>, scalar_prefetch = 0 : i64, scratch_operands = 0 : i64, tpu.core_type = #tpu.core_type<tc>, window_params = [{transform_indices = @transform_0, window_bounds = array<i64: 162, 64>}, {pipeline_mode = #tpu.pipeline_mode<synchronous>, transform_indices = @transform_1, window_bounds = array<i64: 64, 8>}, {pipeline_mode = #tpu.pipeline_mode<synchronous>, transform_indices = @transform_2, window_bounds = array<i64: 1, 8>}, {transform_indices = @transform_3, window_bounds = array<i64: 162, 8>}]} {
    %c0 = arith.constant 0 : index
    %c0_0 = arith.constant 0 : index
    %0 = vector.load %arg1[%c0, %c0_0] : memref<162x64xbf16, #tpu.memory_space<vmem>>, vector<162x64xbf16>
    %c0_1 = arith.constant 0 : index
    %c0_2 = arith.constant 0 : index
    %1 = vector.load %arg2[%c0_1, %c0_2] : memref<64x8xbf16, #tpu.memory_space<vmem>>, vector<64x8xbf16>
    %cst = arith.constant dense<0.000000e+00> : vector<162x8xf32>
    %2 = tpu.matmul %0, %1, %cst {dimension_numbers = #tpu.dot_dimension_numbers<[1], [0], [0], [1], [0, 0, 1, 1], [], []>} : vector<162x64xbf16>, vector<64x8xbf16>, vector<162x8xf32> -> vector<162x8xf32>
    %c0_3 = arith.constant 0 : index
    %c0_4 = arith.constant 0 : index
    %3 = vector.load %arg3[%c0_3, %c0_4] : memref<1x8xf32, #tpu.memory_space<vmem>>, vector<1x8xf32>
    %4 = vector.broadcast %3 : vector<1x8xf32> to vector<162x8xf32>
    %5 = arith.addf %2, %4 : vector<162x8xf32>
    %cst_5 = arith.constant 0.000000e+00 : f32
    %6 = vector.broadcast %cst_5 : f32 to vector<162x8xf32>
    %7 = arith.maximumf %5, %6 : vector<162x8xf32>
    %8 = arith.truncf %7 : vector<162x8xf32> to vector<162x8xbf16>
    %c0_6 = arith.constant 0 : index
    %c0_7 = arith.constant 0 : index
    %9 = vector.load %arg4[%c0_6, %c0_7] : memref<162x8xbf16, #tpu.memory_space<vmem>>, vector<162x8xbf16>
    tpu.vector_store %arg4[%c0_6, %c0_7], %8 {strides = array<i32>} : memref<162x8xbf16, #tpu.memory_space<vmem>>, vector<162x8xbf16>,
    return
  }
  func.func @transform_0(%arg0: i32) -> (i32, i32) {
    %c0_i32 = arith.constant 0 : i32
    %c0_i32_0 = arith.constant 0 : i32
    return %arg0, %c0_i32 : i32, i32
  }
  func.func @transform_1(%arg0: i32) -> (i32, i32) {
    %c0_i32 = arith.constant 0 : i32
    %c0_i32_0 = arith.constant 0 : i32
    %c0_i32_1 = arith.constant 0 : i32
    return %c0_i32, %c0_i32_0 : i32, i32
  }
  func.func @transform_2(%arg0: i32) -> (i32, i32) {
    %c0_i32 = arith.constant 0 : i32
    %c0_i32_0 = arith.constant 0 : i32
    %c0_i32_1 = arith.constant 0 : i32
    return %c0_i32, %c0_i32_0 : i32, i32
  }
  func.func @transform_3(%arg0: i32) -> (i32, i32) {
    %c0_i32 = arith.constant 0 : i32
    %c0_i32_0 = arith.constant 0 : i32
    return %arg0, %c0_i32 : i32, i32
  }
}

module attributes {stable_mosaic.version = 11 : i64} {
  func.func @gemm_bias_act_kernel(%arg0: i32, %arg1: memref<32x72xbf16, #tpu.memory_space<vmem>>, %arg2: memref<72x16xbf16, #tpu.memory_space<vmem>>, %arg3: memref<1x16xf32, #tpu.memory_space<vmem>>, %arg4: memref<32x16xbf16, #tpu.memory_space<vmem>>) attributes {dimension_semantics = [#tpu.dimension_semantics<parallel>], iteration_bounds = array<i64: 1>, scalar_prefetch = 0 : i64, scratch_operands = 0 : i64, tpu.core_type = #tpu.core_type<tc>, window_params = [{transform_indices = @transform_0, window_bounds = array<i64: 32, 72>}, {pipeline_mode = #tpu.pipeline_mode<synchronous>, transform_indices = @transform_1, window_bounds = array<i64: 72, 16>}, {pipeline_mode = #tpu.pipeline_mode<synchronous>, transform_indices = @transform_2, window_bounds = array<i64: 1, 16>}, {transform_indices = @transform_3, window_bounds = array<i64: 32, 16>}]} {
    %c0 = arith.constant 0 : index
    %c0_0 = arith.constant 0 : index
    %0 = vector.load %arg1[%c0, %c0_0] : memref<32x72xbf16, #tpu.memory_space<vmem>>, vector<32x72xbf16>
    %c0_1 = arith.constant 0 : index
    %c0_2 = arith.constant 0 : index
    %1 = vector.load %arg2[%c0_1, %c0_2] : memref<72x16xbf16, #tpu.memory_space<vmem>>, vector<72x16xbf16>
    %cst = arith.constant dense<0.000000e+00> : vector<32x16xf32>
    %2 = tpu.matmul %0, %1, %cst {dimension_numbers = #tpu.dot_dimension_numbers<[1], [0], [0], [1], [0, 0, 1, 1], [], []>} : vector<32x72xbf16>, vector<72x16xbf16>, vector<32x16xf32> -> vector<32x16xf32>
    %c0_3 = arith.constant 0 : index
    %c0_4 = arith.constant 0 : index
    %3 = vector.load %arg3[%c0_3, %c0_4] : memref<1x16xf32, #tpu.memory_space<vmem>>, vector<1x16xf32>
    %4 = vector.broadcast %3 : vector<1x16xf32> to vector<32x16xf32>
    %5 = arith.addf %2, %4 : vector<32x16xf32>
    %cst_5 = arith.constant 0.000000e+00 : f32
    %6 = vector.broadcast %cst_5 : f32 to vector<32x16xf32>
    %7 = arith.maximumf %5, %6 : vector<32x16xf32>
    %8 = arith.truncf %7 : vector<32x16xf32> to vector<32x16xbf16>
    %c0_6 = arith.constant 0 : index
    %c0_7 = arith.constant 0 : index
    %9 = vector.load %arg4[%c0_6, %c0_7] : memref<32x16xbf16, #tpu.memory_space<vmem>>, vector<32x16xbf16>
    tpu.vector_store %arg4[%c0_6, %c0_7], %8 {strides = array<i32>} : memref<32x16xbf16, #tpu.memory_space<vmem>>, vector<32x16xbf16>,
    return
  }
  func.func @transform_0(%arg0: i32) -> (i32, i32) {
    %c0_i32 = arith.constant 0 : i32
    %c0_i32_0 = arith.constant 0 : i32
    return %arg0, %c0_i32 : i32, i32
  }
  func.func @transform_1(%arg0: i32) -> (i32, i32) {
    %c0_i32 = arith.constant 0 : i32
    %c0_i32_0 = arith.constant 0 : i32
    %c0_i32_1 = arith.constant 0 : i32
    return %c0_i32, %c0_i32_0 : i32, i32
  }
  func.func @transform_2(%arg0: i32) -> (i32, i32) {
    %c0_i32 = arith.constant 0 : i32
    %c0_i32_0 = arith.constant 0 : i32
    %c0_i32_1 = arith.constant 0 : i32
    return %c0_i32, %c0_i32_0 : i32, i32
  }
  func.func @transform_3(%arg0: i32) -> (i32, i32) {
    %c0_i32 = arith.constant 0 : i32
    %c0_i32_0 = arith.constant 0 : i32
    return %arg0, %c0_i32 : i32, i32
  }
}

module attributes {stable_mosaic.version = 11 : i64} {
  func.func @gemm_bias_act_kernel(%arg0: i32, %arg1: memref<8x144xbf16, #tpu.memory_space<vmem>>, %arg2: memref<144x16xbf16, #tpu.memory_space<vmem>>, %arg3: memref<1x16xf32, #tpu.memory_space<vmem>>, %arg4: memref<8x16xbf16, #tpu.memory_space<vmem>>) attributes {dimension_semantics = [#tpu.dimension_semantics<parallel>], iteration_bounds = array<i64: 1>, scalar_prefetch = 0 : i64, scratch_operands = 0 : i64, tpu.core_type = #tpu.core_type<tc>, window_params = [{transform_indices = @transform_0, window_bounds = array<i64: 8, 144>}, {pipeline_mode = #tpu.pipeline_mode<synchronous>, transform_indices = @transform_1, window_bounds = array<i64: 144, 16>}, {pipeline_mode = #tpu.pipeline_mode<synchronous>, transform_indices = @transform_2, window_bounds = array<i64: 1, 16>}, {transform_indices = @transform_3, window_bounds = array<i64: 8, 16>}]} {
    %c0 = arith.constant 0 : index
    %c0_0 = arith.constant 0 : index
    %0 = vector.load %arg1[%c0, %c0_0] : memref<8x144xbf16, #tpu.memory_space<vmem>>, vector<8x144xbf16>
    %c0_1 = arith.constant 0 : index
    %c0_2 = arith.constant 0 : index
    %1 = vector.load %arg2[%c0_1, %c0_2] : memref<144x16xbf16, #tpu.memory_space<vmem>>, vector<144x16xbf16>
    %cst = arith.constant dense<0.000000e+00> : vector<8x16xf32>
    %2 = tpu.matmul %0, %1, %cst {dimension_numbers = #tpu.dot_dimension_numbers<[1], [0], [0], [1], [0, 0, 1, 1], [], []>} : vector<8x144xbf16>, vector<144x16xbf16>, vector<8x16xf32> -> vector<8x16xf32>
    %c0_3 = arith.constant 0 : index
    %c0_4 = arith.constant 0 : index
    %3 = vector.load %arg3[%c0_3, %c0_4] : memref<1x16xf32, #tpu.memory_space<vmem>>, vector<1x16xf32>
    %4 = vector.broadcast %3 : vector<1x16xf32> to vector<8x16xf32>
    %5 = arith.addf %2, %4 : vector<8x16xf32>
    %cst_5 = arith.constant 0.000000e+00 : f32
    %6 = vector.broadcast %cst_5 : f32 to vector<8x16xf32>
    %7 = arith.maximumf %5, %6 : vector<8x16xf32>
    %8 = arith.truncf %7 : vector<8x16xf32> to vector<8x16xbf16>
    %c0_6 = arith.constant 0 : index
    %c0_7 = arith.constant 0 : index
    %9 = vector.load %arg4[%c0_6, %c0_7] : memref<8x16xbf16, #tpu.memory_space<vmem>>, vector<8x16xbf16>
    tpu.vector_store %arg4[%c0_6, %c0_7], %8 {strides = array<i32>} : memref<8x16xbf16, #tpu.memory_space<vmem>>, vector<8x16xbf16>,
    return
  }
  func.func @transform_0(%arg0: i32) -> (i32, i32) {
    %c0_i32 = arith.constant 0 : i32
    %c0_i32_0 = arith.constant 0 : i32
    return %arg0, %c0_i32 : i32, i32
  }
  func.func @transform_1(%arg0: i32) -> (i32, i32) {
    %c0_i32 = arith.constant 0 : i32
    %c0_i32_0 = arith.constant 0 : i32
    %c0_i32_1 = arith.constant 0 : i32
    return %c0_i32, %c0_i32_0 : i32, i32
  }
  func.func @transform_2(%arg0: i32) -> (i32, i32) {
    %c0_i32 = arith.constant 0 : i32
    %c0_i32_0 = arith.constant 0 : i32
    %c0_i32_1 = arith.constant 0 : i32
    return %c0_i32, %c0_i32_0 : i32, i32
  }
  func.func @transform_3(%arg0: i32) -> (i32, i32) {
    %c0_i32 = arith.constant 0 : i32
    %c0_i32_0 = arith.constant 0 : i32
    return %arg0, %c0_i32 : i32, i32
  }
}

module attributes {stable_mosaic.version = 11 : i64} {
  func.func @head_kernel(%arg0: i32, %arg1: memref<2x64xbf16, #tpu.memory_space<vmem>>, %arg2: memref<64x32xbf16, #tpu.memory_space<vmem>>, %arg3: memref<1x32xf32, #tpu.memory_space<vmem>>, %arg4: memref<32x6xbf16, #tpu.memory_space<vmem>>, %arg5: memref<1x6xf32, #tpu.memory_space<vmem>>, %arg6: memref<1x32xf32, #tpu.memory_space<vmem>>, %arg7: memref<1x1xf32, #tpu.memory_space<vmem>>, %arg8: memref<2x6xf32, #tpu.memory_space<vmem>>, %arg9: memref<2x1xf32, #tpu.memory_space<vmem>>) attributes {dimension_semantics = [#tpu.dimension_semantics<parallel>], iteration_bounds = array<i64: 1>, scalar_prefetch = 0 : i64, scratch_operands = 0 : i64, tpu.core_type = #tpu.core_type<tc>, window_params = [{transform_indices = @transform_0, window_bounds = array<i64: 2, 64>}, {pipeline_mode = #tpu.pipeline_mode<synchronous>, transform_indices = @transform_1, window_bounds = array<i64: 64, 32>}, {pipeline_mode = #tpu.pipeline_mode<synchronous>, transform_indices = @transform_2, window_bounds = array<i64: 1, 32>}, {pipeline_mode = #tpu.pipeline_mode<synchronous>, transform_indices = @transform_3, window_bounds = array<i64: 32, 6>}, {pipeline_mode = #tpu.pipeline_mode<synchronous>, transform_indices = @transform_4, window_bounds = array<i64: 1, 6>}, {pipeline_mode = #tpu.pipeline_mode<synchronous>, transform_indices = @transform_5, window_bounds = array<i64: 1, 32>}, {pipeline_mode = #tpu.pipeline_mode<synchronous>, transform_indices = @transform_6, window_bounds = array<i64: 1, 1>}, {transform_indices = @transform_7, window_bounds = array<i64: 2, 6>}, {transform_indices = @transform_8, window_bounds = array<i64: 2, 1>}]} {
    %c0 = arith.constant 0 : index
    %c0_0 = arith.constant 0 : index
    %0 = vector.load %arg1[%c0, %c0_0] : memref<2x64xbf16, #tpu.memory_space<vmem>>, vector<2x64xbf16>
    %c0_1 = arith.constant 0 : index
    %c0_2 = arith.constant 0 : index
    %1 = vector.load %arg2[%c0_1, %c0_2] : memref<64x32xbf16, #tpu.memory_space<vmem>>, vector<64x32xbf16>
    %cst = arith.constant dense<0.000000e+00> : vector<2x32xf32>
    %2 = tpu.matmul %0, %1, %cst {dimension_numbers = #tpu.dot_dimension_numbers<[1], [0], [0], [1], [0, 0, 1, 1], [], []>} : vector<2x64xbf16>, vector<64x32xbf16>, vector<2x32xf32> -> vector<2x32xf32>
    %c0_3 = arith.constant 0 : index
    %c0_4 = arith.constant 0 : index
    %3 = vector.load %arg3[%c0_3, %c0_4] : memref<1x32xf32, #tpu.memory_space<vmem>>, vector<1x32xf32>
    %4 = vector.broadcast %3 : vector<1x32xf32> to vector<2x32xf32>
    %5 = arith.addf %2, %4 : vector<2x32xf32>
    %cst_5 = arith.constant 0.000000e+00 : f32
    %6 = vector.broadcast %cst_5 : f32 to vector<2x32xf32>
    %7 = arith.maximumf %5, %6 : vector<2x32xf32>
    %8 = arith.truncf %7 : vector<2x32xf32> to vector<2x32xbf16>
    %c0_6 = arith.constant 0 : index
    %c0_7 = arith.constant 0 : index
    %9 = vector.load %arg4[%c0_6, %c0_7] : memref<32x6xbf16, #tpu.memory_space<vmem>>, vector<32x6xbf16>
    %cst_8 = arith.constant dense<0.000000e+00> : vector<2x6xf32>
    %10 = tpu.matmul %8, %9, %cst_8 {dimension_numbers = #tpu.dot_dimension_numbers<[1], [0], [0], [1], [0, 0, 1, 1], [], []>} : vector<2x32xbf16>, vector<32x6xbf16>, vector<2x6xf32> -> vector<2x6xf32>
    %c0_9 = arith.constant 0 : index
    %c0_10 = arith.constant 0 : index
    %11 = vector.load %arg5[%c0_9, %c0_10] : memref<1x6xf32, #tpu.memory_space<vmem>>, vector<1x6xf32>
    %12 = vector.broadcast %11 : vector<1x6xf32> to vector<2x6xf32>
    %13 = arith.addf %10, %12 : vector<2x6xf32>
    %cst_11 = arith.constant dense<0xFF800000> : vector<2xf32>
    %14 = vector.multi_reduction <maximumf>, %13, %cst_11 [1] : vector<2x6xf32> to vector<2xf32>
    %15 = vector.shape_cast %14 : vector<2xf32> to vector<2x1xf32>
    %16 = vector.broadcast %15 : vector<2x1xf32> to vector<2x6xf32>
    %17 = arith.subf %13, %16 : vector<2x6xf32>
    %18 = math.exp %17 : vector<2x6xf32>
    %cst_12 = arith.constant dense<0.000000e+00> : vector<2xf32>
    %19 = vector.multi_reduction <add>, %18, %cst_12 [1] : vector<2x6xf32> to vector<2xf32>
    %20 = vector.shape_cast %19 : vector<2xf32> to vector<2x1xf32>
    %21 = tpu.reciprocal %20 {approx = true} : vector<2x1xf32> -> vector<2x1xf32>
    %22 = vector.broadcast %21 : vector<2x1xf32> to vector<2x6xf32>
    %23 = arith.mulf %18, %22 : vector<2x6xf32>
    %c0_13 = arith.constant 0 : index
    %c0_14 = arith.constant 0 : index
    %24 = vector.load %arg8[%c0_13, %c0_14] : memref<2x6xf32, #tpu.memory_space<vmem>>, vector<2x6xf32>
    tpu.vector_store %arg8[%c0_13, %c0_14], %23 {strides = array<i32>} : memref<2x6xf32, #tpu.memory_space<vmem>>, vector<2x6xf32>,
    %c0_15 = arith.constant 0 : index
    %c0_16 = arith.constant 0 : index
    %25 = vector.load %arg6[%c0_15, %c0_16] : memref<1x32xf32, #tpu.memory_space<vmem>>, vector<1x32xf32>
    %26 = vector.broadcast %25 : vector<1x32xf32> to vector<2x32xf32>
    %27 = arith.mulf %7, %26 : vector<2x32xf32>
    %cst_17 = arith.constant dense<0.000000e+00> : vector<2xf32>
    %28 = vector.multi_reduction <add>, %27, %cst_17 [1] : vector<2x32xf32> to vector<2xf32>
    %29 = vector.shape_cast %28 : vector<2xf32> to vector<2x1xf32>
    %c0_18 = arith.constant 0 : index
    %c0_19 = arith.constant 0 : index
    %30 = vector.load %arg7[%c0_18, %c0_19] : memref<1x1xf32, #tpu.memory_space<vmem>>, vector<1x1xf32>
    %31 = vector.broadcast %30 : vector<1x1xf32> to vector<2x1xf32>
    %32 = arith.addf %29, %31 : vector<2x1xf32>
    %c0_20 = arith.constant 0 : index
    %c0_21 = arith.constant 0 : index
    %33 = vector.load %arg9[%c0_20, %c0_21] : memref<2x1xf32, #tpu.memory_space<vmem>>, vector<2x1xf32>
    tpu.vector_store %arg9[%c0_20, %c0_21], %32 {strides = array<i32>} : memref<2x1xf32, #tpu.memory_space<vmem>>, vector<2x1xf32>,
    return
  }
  func.func @transform_0(%arg0: i32) -> (i32, i32) {
    %c0_i32 = arith.constant 0 : i32
    %c0_i32_0 = arith.constant 0 : i32
    return %arg0, %c0_i32 : i32, i32
  }
  func.func @transform_1(%arg0: i32) -> (i32, i32) {
    %c0_i32 = arith.constant 0 : i32
    %c0_i32_0 = arith.constant 0 : i32
    %c0_i32_1 = arith.constant 0 : i32
    return %c0_i32, %c0_i32_0 : i32, i32
  }
  func.func @transform_2(%arg0: i32) -> (i32, i32) {
    %c0_i32 = arith.constant 0 : i32
    %c0_i32_0 = arith.constant 0 : i32
    %c0_i32_1 = arith.constant 0 : i32
    return %c0_i32, %c0_i32_0 : i32, i32
  }
  func.func @transform_3(%arg0: i32) -> (i32, i32) {
    %c0_i32 = arith.constant 0 : i32
    %c0_i32_0 = arith.constant 0 : i32
    %c0_i32_1 = arith.constant 0 : i32
    return %c0_i32, %c0_i32_0 : i32, i32
  }
  func.func @transform_4(%arg0: i32) -> (i32, i32) {
    %c0_i32 = arith.constant 0 : i32
    %c0_i32_0 = arith.constant 0 : i32
    %c0_i32_1 = arith.constant 0 : i32
    return %c0_i32, %c0_i32_0 : i32, i32
  }
  func.func @transform_5(%arg0: i32) -> (i32, i32) {
    %c0_i32 = arith.constant 0 : i32
    %c0_i32_0 = arith.constant 0 : i32
    %c0_i32_1 = arith.constant 0 : i32
    return %c0_i32, %c0_i32_0 : i32, i32
  }
  func.func @transform_6(%arg0: i32) -> (i32, i32) {
    %c0_i32 = arith.constant 0 : i32
    %c0_i32_0 = arith.constant 0 : i32
    %c0_i32_1 = arith.constant 0 : i32
    return %c0_i32, %c0_i32_0 : i32, i32
  }
  func.func @transform_7(%arg0: i32) -> (i32, i32) {
    %c0_i32 = arith.constant 0 : i32
    %c0_i32_0 = arith.constant 0 : i32
    return %arg0, %c0_i32 : i32, i32
  }
  func.func @transform_8(%arg0: i32) -> (i32, i32) {
    %c0_i32 = arith.constant 0 : i32
    %c0_i32_0 = arith.constant 0 : i32
    return %arg0, %c0_i32 : i32, i32
  }
}

</mosaic_0001>

<llo_original>
// kernel: forward.4
$region0: #{forward.4}
  #allocation0 [shape = 'u32[]', space=smem, size = 0x4, offset = 0x4, fixed_abs, tag = 'smem constant byte address 0x4 - core index']
  #allocation1 [shape = 'u32[72,128]{1,0:T(1,128)}', space=vmem, size = 0x9000, scoped, tag = 'internal scratch']
  %s0 = inlined_call_operand.vmem [shape: bf16[162,64], index: 0, kind: input, shape index: {}]
  %s1 = inlined_call_operand.vmem [shape: bf16[64,8], index: 1, kind: input, shape index: {}]
  %s2 = inlined_call_operand.vmem [shape: f32[1,8], index: 2, kind: input, shape index: {}]
  %s3 = inlined_call_operand.vmem [shape: bf16[162,8], index: 3, kind: output, shape index: {}]
  %s4 = sld [smem:[#allocation0]]
  $region22: #{forward.4} parent=0
    _
  %s6 = ssub.s32 1, %s4
  %s7 = scalar_select 0, %s6, %s4
  // Predicated region
  $region2: #{forward.4} parent=0 // pred_check
    _
  $region3: #{forward.4} parent=0 // pred_check_branch
    %9 = sbr.rel (0) target = $region5
  $region4: #{forward.4} parent=0 // pred_region
    _
  $region5: #{forward.4} parent=0 // pred_fallthru
    _
  // Predicated region
  $region6: #{forward.4} parent=0 // pred_check
    _
  $region7: #{forward.4} parent=0 // pred_check_branch
    %11 = sbr.rel (0) target = $region9
  $region8: #{forward.4} parent=0 // pred_region
    _
  $region9: #{forward.4} parent=0 // pred_fallthru
    _
  // Predicated region
  $region10: #{forward.4} parent=0 // pred_check
    _
  $region11: #{forward.4} parent=0 // pred_check_branch
    %13 = sbr.rel (0) target = $region13
  $region12: #{forward.4} parent=0 // pred_region
    _
  $region13: #{forward.4} parent=0 // pred_fallthru
    _
  %v15 = vld [vmem:[%s0] sm:$0xf]
  %v16 = vld [vmem:[%s0 + $0x4] sm:$0xf]
  %v17 = vld [vmem:[%s0 + $0x8] sm:$0xf]
  %v18 = vld [vmem:[%s0 + $0xc] sm:$0xf]
  %v19 = vld [vmem:[%s0 + $0x10] sm:$0xf]
  %v20 = vld [vmem:[%s0 + $0x14] sm:$0xf]
  %v21 = vld [vmem:[%s0 + $0x18] sm:$0xf]
  %v22 = vld [vmem:[%s0 + $0x1c] sm:$0xf]
  %v23 = vld [vmem:[%s0 + $0x20] sm:$0xf]
  %v24 = vld [vmem:[%s0 + $0x24] sm:$0xf]
  %v25 = vld [vmem:[%s0 + $0x28] sm:$0xf]
  %v26 = vld [vmem:[%s0 + $0x2c] sm:$0xf]
  %v27 = vld [vmem:[%s0 + $0x30] sm:$0xf]
  %v28 = vld [vmem:[%s0 + $0x34] sm:$0xf]
  %v29 = vld [vmem:[%s0 + $0x38] sm:$0xf]
  %v30 = vld [vmem:[%s0 + $0x3c] sm:$0xf]
  %v31 = vld [vmem:[%s0 + $0x40] sm:$0xf]
  %v32 = vld [vmem:[%s0 + $0x44] sm:$0xf]
  %v33 = vld [vmem:[%s0 + $0x48] sm:$0xf]
  %v34 = vld [vmem:[%s0 + $0x4c] sm:$0xf]
  %v35 = vld [vmem:[%s0 + $0x50] sm:$0x1]
  %v36 = vld [vmem:[%s1] sm:$0xf]
  %v37 = vld [vmem:[%s1 + $0x4] sm:$0xf]
  %v38 = vld [vmem:[%s1 + $0x8] sm:$0xf]
  %v39 = vld [vmem:[%s1 + $0xc] sm:$0xf]
  %v40 = vld [vmem:[%s1 + $0x10] sm:$0xf]
  %v41 = vld [vmem:[%s1 + $0x14] sm:$0xf]
  %v42 = vld [vmem:[%s1 + $0x18] sm:$0xf]
  %v43 = vld [vmem:[%s1 + $0x1c] sm:$0xf]
  %v44 = vld [vmem:[%s2] sm:$0x1]
  %v46 = vperm.slane %v44, 0
  %v69 = vunpack.c.l.b16 %v15
  %v70 = vunpack.c.l.b16 %v16
  %v71 = vunpack.c.l.b16 %v17
  %v72 = vunpack.c.l.b16 %v18
  %v73 = vunpack.c.l.b16 %v19
  %v74 = vunpack.c.l.b16 %v20
  %v75 = vunpack.c.l.b16 %v21
  %v76 = vunpack.c.l.b16 %v22
  %v77 = vunpack.c.l.b16 %v23
  %v78 = vunpack.c.l.b16 %v24
  %v79 = vunpack.c.l.b16 %v25
  %v80 = vunpack.c.l.b16 %v26
  %v81 = vunpack.c.l.b16 %v27
  %v82 = vunpack.c.l.b16 %v28
  %v83 = vunpack.c.l.b16 %v29
  %v84 = vunpack.c.l.b16 %v30
  %v85 = vunpack.c.l.b16 %v31
  %v86 = vunpack.c.l.b16 %v32
  %v87 = vunpack.c.l.b16 %v33
  %v88 = vunpack.c.l.b16 %v34
  %v89 = vunpack.c.l.b16 %v35
  %v90 = vpack.c.b16 %v70, %v69
  %v91 = vpack.c.b16 %v72, %v71
  %v92 = vpack.c.b16 %v74, %v73
  %v93 = vpack.c.b16 %v76, %v75
  %v94 = vpack.c.b16 %v78, %v77
  %v95 = vpack.c.b16 %v80, %v79
  %v96 = vpack.c.b16 %v82, %v81
  %v97 = vpack.c.b16 %v84, %v83
  %v98 = vpack.c.b16 %v86, %v85
  %v99 = vpack.c.b16 %v88, %v87
  %v100 = vpack.c.b16 %v89, %v89
  %v109 = vunpack.c.l.b16 %v36
  %v110 = vunpack.c.l.b16 %v37
  %v111 = vunpack.c.l.b16 %v38
  %v112 = vunpack.c.l.b16 %v39
  %v113 = vunpack.c.l.b16 %v40
  %v114 = vunpack.c.l.b16 %v41
  %v115 = vunpack.c.l.b16 %v42
  %v116 = vunpack.c.l.b16 %v43
  %v117 = vpack.c.b16 %v110, %v109
  %v118 = vpack.c.b16 %v112, %v111
  %v119 = vpack.c.b16 %v114, %v113
  %v120 = vpack.c.b16 %v116, %v115
  %vm125 = vcmask 523264
  %v127 = vsel %vm125, %v90, 0
  %v130 = vsel %vm125, %v91, 0
  %v133 = vsel %vm125, %v92, 0
  %v136 = vsel %vm125, %v93, 0
  %v139 = vsel %vm125, %v94, 0
  %v142 = vsel %vm125, %v95, 0
  %v145 = vsel %vm125, %v96, 0
  %v148 = vsel %vm125, %v97, 0
  %v151 = vsel %vm125, %v98, 0
  %v154 = vsel %vm125, %v99, 0
  %v157 = vsel %vm125, %v100, 0
  %159 = vmatpush.bf16.msra.mxu0 0
  %160 = vmatpush.bf16.msra.mxu0 0
  %161 = vmatpush.bf16.msra.mxu0 0
  %162 = vmatpush.bf16.msra.mxu0 0
  %163 = vmatpush.bf16.msra.mxu0 %v120
  %164 = vmatpush.bf16.msra.mxu0 %v119
  %165 = vmatpush.bf16.msra.mxu0 %v118
  %166 = vmatpush.bf16.msra.mxu0 %v117
  %167 = vmatmul.bf16.gmra.mxu0 %v127
  %v168 = vpop.f32.mrf.mxu0
  %v169 = vadd.f32 %v46, %v168
  %v170 = vpop.f32.mrf.mxu0
  %v171 = vadd.f32 %v46, %v170
  %172 = vmatmul.bf16.gmra.mxu0 %v130
  %v173 = vpop.f32.mrf.mxu0
  %v174 = vadd.f32 %v46, %v173
  %v175 = vpop.f32.mrf.mxu0
  %v176 = vadd.f32 %v46, %v175
  %177 = vmatmul.bf16.gmra.mxu0 %v133
  %v178 = vpop.f32.mrf.mxu0
  %v179 = vadd.f32 %v46, %v178
  %v180 = vpop.f32.mrf.mxu0
  %v181 = vadd.f32 %v46, %v180
  %182 = vmatmul.bf16.gmra.mxu0 %v136
  %v183 = vpop.f32.mrf.mxu0
  %v184 = vadd.f32 %v46, %v183
  %v185 = vpop.f32.mrf.mxu0
  %v186 = vadd.f32 %v46, %v185
  %187 = vmatmul.bf16.gmra.mxu0 %v139
  %v188 = vpop.f32.mrf.mxu0
  %v189 = vadd.f32 %v46, %v188
  %v190 = vpop.f32.mrf.mxu0
  %v191 = vadd.f32 %v46, %v190
  %192 = vmatmul.bf16.gmra.mxu0 %v142
  %v193 = vpop.f32.mrf.mxu0
  %v194 = vadd.f32 %v46, %v193
  %v195 = vpop.f32.mrf.mxu0
  %v196 = vadd.f32 %v46, %v195
  %197 = vmatmul.bf16.gmra.mxu0 %v145
  %v198 = vpop.f32.mrf.mxu0
  %v199 = vadd.f32 %v46, %v198
  %v200 = vpop.f32.mrf.mxu0
  %v201 = vadd.f32 %v46, %v200
  %202 = vmatmul.bf16.gmra.mxu0 %v148
  %v203 = vpop.f32.mrf.mxu0
  %v204 = vadd.f32 %v46, %v203
  %v205 = vpop.f32.mrf.mxu0
  %v206 = vadd.f32 %v46, %v205
  %207 = vmatmul.bf16.gmra.mxu0 %v151
  %v208 = vpop.f32.mrf.mxu0
  %v209 = vadd.f32 %v46, %v208
  %v210 = vpop.f32.mrf.mxu0
  %v211 = vadd.f32 %v46, %v210
  %212 = vmatmul.bf16.gmra.mxu0 %v154
  %v213 = vpop.f32.mrf.mxu0
  %v214 = vadd.f32 %v46, %v213
  %v215 = vpop.f32.mrf.mxu0
  %v216 = vadd.f32 %v46, %v215
  %217 = vmatmul.bf16.gmra.mxu0 %v157
  %v218 = vpop.f32.mrf.mxu0
  %v219 = vadd.f32 %v46, %v218
  %v220 = vpop.f32.mrf.mxu0
  %221 = vdwg.mxu0
  %v222 = vmax.f32 %v169, 0.0
  %v223 = vmax.f32 %v171, 0.0
  %v224 = vmax.f32 %v174, 0.0
  %v225 = vmax.f32 %v176, 0.0
  %v226 = vmax.f32 %v179, 0.0
  %v227 = vmax.f32 %v181, 0.0
  %v228 = vmax.f32 %v184, 0.0
  %v229 = vmax.f32 %v186, 0.0
  %v230 = vmax.f32 %v189, 0.0
  %v231 = vmax.f32 %v191, 0.0
  %v232 = vmax.f32 %v194, 0.0
  %v233 = vmax.f32 %v196, 0.0
  %v234 = vmax.f32 %v199, 0.0
  %v235 = vmax.f32 %v201, 0.0
  %v236 = vmax.f32 %v204, 0.0
  %v237 = vmax.f32 %v206, 0.0
  %v238 = vmax.f32 %v209, 0.0
  %v239 = vmax.f32 %v211, 0.0
  %v240 = vmax.f32 %v214, 0.0
  %v241 = vmax.f32 %v216, 0.0
  %v242 = vmax.f32 %v219, 0.0
  %v243 = vpack.c.bf16 %v222, %v222
  %v244 = vpack.c.bf16 %v223, %v223
  %v245 = vpack.c.bf16 %v224, %v224
  %v246 = vpack.c.bf16 %v225, %v225
  %v247 = vpack.c.bf16 %v226, %v226
  %v248 = vpack.c.bf16 %v227, %v227
  %v249 = vpack.c.bf16 %v228, %v228
  %v250 = vpack.c.bf16 %v229, %v229
  %v251 = vpack.c.bf16 %v230, %v230
  %v252 = vpack.c.bf16 %v231, %v231
  %v253 = vpack.c.bf16 %v232, %v232
  %v254 = vpack.c.bf16 %v233, %v233
  %v255 = vpack.c.bf16 %v234, %v234
  %v256 = vpack.c.bf16 %v235, %v235
  %v257 = vpack.c.bf16 %v236, %v236
  %v258 = vpack.c.bf16 %v237, %v237
  %v259 = vpack.c.bf16 %v238, %v238
  %v260 = vpack.c.bf16 %v239, %v239
  %v261 = vpack.c.bf16 %v240, %v240
  %v262 = vpack.c.bf16 %v241, %v241
  %v263 = vpack.c.bf16 %v242, %v242
  %vm264 = vcmask 60416
  %265 = vst.msk [vmem:[%s3] sm:$0xf] %vm264, %v243
  %266 = vst.msk [vmem:[%s3 + $0x4] sm:$0xf] %vm264, %v244
  %267 = vst.msk [vmem:[%s3 + $0x8] sm:$0xf] %vm264, %v245
  %268 = vst.msk [vmem:[%s3 + $0xc] sm:$0xf] %vm264, %v246
  %269 = vst.msk [vmem:[%s3 + $0x10] sm:$0xf] %vm264, %v247
  %270 = vst.msk [vmem:[%s3 + $0x14] sm:$0xf] %vm264, %v248
  %271 = vst.msk [vmem:[%s3 + $0x18] sm:$0xf] %vm264, %v249
  %272 = vst.msk [vmem:[%s3 + $0x1c] sm:$0xf] %vm264, %v250
  %273 = vst.msk [vmem:[%s3 + $0x20] sm:$0xf] %vm264, %v251
  %274 = vst.msk [vmem:[%s3 + $0x24] sm:$0xf] %vm264, %v252
  %275 = vst.msk [vmem:[%s3 + $0x28] sm:$0xf] %vm264, %v253
  %276 = vst.msk [vmem:[%s3 + $0x2c] sm:$0xf] %vm264, %v254
  %277 = vst.msk [vmem:[%s3 + $0x30] sm:$0xf] %vm264, %v255
  %278 = vst.msk [vmem:[%s3 + $0x34] sm:$0xf] %vm264, %v256
  %279 = vst.msk [vmem:[%s3 + $0x38] sm:$0xf] %vm264, %v257
  %280 = vst.msk [vmem:[%s3 + $0x3c] sm:$0xf] %vm264, %v258
  %281 = vst.msk [vmem:[%s3 + $0x40] sm:$0xf] %vm264, %v259
  %282 = vst.msk [vmem:[%s3 + $0x44] sm:$0xf] %vm264, %v260
  %283 = vst.msk [vmem:[%s3 + $0x48] sm:$0xf] %vm264, %v261
  %284 = vst.msk [vmem:[%s3 + $0x4c] sm:$0xf] %vm264, %v262
  %vm285 = vcmask 57344
  %286 = vst.msk [vmem:[%s3 + $0x50] sm:$0x1] %vm285, %v263
  // Predicated region
  $region14: #{forward.4} parent=0 // pred_check
    _
  $region15: #{forward.4} parent=0 // pred_check_branch
    %288 = sbr.rel (0) target = $region17
  $region16: #{forward.4} parent=0 // pred_region
    _
  $region17: #{forward.4} parent=0 // pred_fallthru
    _
  // Predicated region
  $region18: #{forward.4} parent=0 // pred_check
    _
  $region19: #{forward.4} parent=0 // pred_check_branch
    %290 = sbr.rel (0) target = $region21
  $region20: #{forward.4} parent=0 // pred_region
    _
  $region21: #{forward.4} parent=0 // pred_fallthru
    _

// kernel: forward.5
$region0: #{forward.5}
  #allocation0 [shape = 'u32[]', space=smem, size = 0x4, offset = 0x4, fixed_abs, tag = 'smem constant byte address 0x4 - core index']
  #allocation1 [shape = 'u32[72,128]{1,0:T(1,128)}', space=vmem, size = 0x9000, scoped, tag = 'internal scratch']
  %s0 = inlined_call_operand.vmem [shape: bf16[32,72], index: 0, kind: input, shape index: {}]
  %s1 = inlined_call_operand.vmem [shape: bf16[72,16], index: 1, kind: input, shape index: {}]
  %s2 = inlined_call_operand.vmem [shape: f32[1,16], index: 2, kind: input, shape index: {}]
  %s3 = inlined_call_operand.vmem [shape: bf16[32,16], index: 3, kind: output, shape index: {}]
  %s4 = sld [smem:[#allocation0]]
  $region22: #{forward.5} parent=0
    _
  %s6 = ssub.s32 1, %s4
  %s7 = scalar_select 0, %s6, %s4
  // Predicated region
  $region2: #{forward.5} parent=0 // pred_check
    _
  $region3: #{forward.5} parent=0 // pred_check_branch
    %9 = sbr.rel (0) target = $region5
  $region4: #{forward.5} parent=0 // pred_region
    _
  $region5: #{forward.5} parent=0 // pred_fallthru
    _
  // Predicated region
  $region6: #{forward.5} parent=0 // pred_check
    _
  $region7: #{forward.5} parent=0 // pred_check_branch
    %11 = sbr.rel (0) target = $region9
  $region8: #{forward.5} parent=0 // pred_region
    _
  $region9: #{forward.5} parent=0 // pred_fallthru
    _
  // Predicated region
  $region10: #{forward.5} parent=0 // pred_check
    _
  $region11: #{forward.5} parent=0 // pred_check_branch
    %13 = sbr.rel (0) target = $region13
  $region12: #{forward.5} parent=0 // pred_region
    _
  $region13: #{forward.5} parent=0 // pred_fallthru
    _
  %v15 = vld [vmem:[%s0] sm:$0xf]
  %v16 = vld [vmem:[%s0 + $0x4] sm:$0xf]
  %v17 = vld [vmem:[%s0 + $0x8] sm:$0xf]
  %v18 = vld [vmem:[%s0 + $0xc] sm:$0xf]
  %v19 = vld [vmem:[%s1] sm:$0xf]
  %v20 = vld [vmem:[%s1 + $0x4] sm:$0xf]
  %v21 = vld [vmem:[%s1 + $0x8] sm:$0xf]
  %v22 = vld [vmem:[%s1 + $0xc] sm:$0xf]
  %v23 = vld [vmem:[%s1 + $0x10] sm:$0xf]
  %v24 = vld [vmem:[%s1 + $0x14] sm:$0xf]
  %v25 = vld [vmem:[%s1 + $0x18] sm:$0xf]
  %v26 = vld [vmem:[%s1 + $0x1c] sm:$0xf]
  %v27 = vld [vmem:[%s1 + $0x20] sm:$0xf]
  %v28 = vld [vmem:[%s2] sm:$0x1]
  %v30 = vperm.slane %v28, 0
  %v36 = vunpack.c.l.b16 %v15
  %v37 = vunpack.c.l.b16 %v16
  %v38 = vunpack.c.l.b16 %v17
  %v39 = vunpack.c.l.b16 %v18
  %v40 = vpack.c.b16 %v37, %v36
  %v41 = vpack.c.b16 %v39, %v38
  %v51 = vunpack.c.l.b16 %v19
  %v52 = vunpack.c.l.b16 %v20
  %v53 = vunpack.c.l.b16 %v21
  %v54 = vunpack.c.l.b16 %v22
  %v55 = vunpack.c.l.b16 %v23
  %v56 = vunpack.c.l.b16 %v24
  %v57 = vunpack.c.l.b16 %v25
  %v58 = vunpack.c.l.b16 %v26
  %v59 = vunpack.c.l.b16 %v27
  %v60 = vpack.c.b16 %v52, %v51
  %v61 = vpack.c.b16 %v54, %v53
  %v62 = vpack.c.b16 %v56, %v55
  %v63 = vpack.c.b16 %v58, %v57
  %v64 = vpack.c.b16 %v59, %v59
  %vm69 = vcmask 588800
  %v71 = vsel %vm69, %v40, 0
  %v74 = vsel %vm69, %v41, 0
  %vm76 = vcmask 1043456
  %v78 = vsel %vm76, %v64, 0
  %80 = vmatpush.bf16.msra.mxu0 0
  %81 = vmatpush.bf16.msra.mxu0 0
  %82 = vmatpush.bf16.msra.mxu0 0
  %83 = vmatpush.bf16.msra.mxu0 %v78
  %84 = vmatpush.bf16.msra.mxu0 %v63
  %85 = vmatpush.bf16.msra.mxu0 %v62
  %86 = vmatpush.bf16.msra.mxu0 %v61
  %87 = vmatpush.bf16.msra.mxu0 %v60
  %88 = vmatmul.bf16.gmra.mxu0 %v71
  %v89 = vpop.f32.mrf.mxu0
  %v90 = vadd.f32 %v30, %v89
  %v91 = vpop.f32.mrf.mxu0
  %v92 = vadd.f32 %v30, %v91
  %93 = vmatmul.bf16.gmra.mxu0 %v74
  %v94 = vpop.f32.mrf.mxu0
  %v95 = vadd.f32 %v30, %v94
  %v96 = vpop.f32.mrf.mxu0
  %v97 = vadd.f32 %v30, %v96
  %98 = vdwg.mxu0
  %v99 = vmax.f32 %v90, 0.0
  %v100 = vmax.f32 %v92, 0.0
  %v101 = vmax.f32 %v95, 0.0
  %v102 = vmax.f32 %v97, 0.0
  %v103 = vpack.c.bf16 %v99, %v99
  %v104 = vpack.c.bf16 %v100, %v100
  %v105 = vpack.c.bf16 %v101, %v101
  %v106 = vpack.c.bf16 %v102, %v102
  %vm107 = vcmask 125952
  %108 = vst.msk [vmem:[%s3] sm:$0xf] %vm107, %v103
  %109 = vst.msk [vmem:[%s3 + $0x4] sm:$0xf] %vm107, %v104
  %110 = vst.msk [vmem:[%s3 + $0x8] sm:$0xf] %vm107, %v105
  %111 = vst.msk [vmem:[%s3 + $0xc] sm:$0xf] %vm107, %v106
  // Predicated region
  $region14: #{forward.5} parent=0 // pred_check
    _
  $region15: #{forward.5} parent=0 // pred_check_branch
    %113 = sbr.rel (0) target = $region17
  $region16: #{forward.5} parent=0 // pred_region
    _
  $region17: #{forward.5} parent=0 // pred_fallthru
    _
  // Predicated region
  $region18: #{forward.5} parent=0 // pred_check
    _
  $region19: #{forward.5} parent=0 // pred_check_branch
    %115 = sbr.rel (0) target = $region21
  $region20: #{forward.5} parent=0 // pred_region
    _
  $region21: #{forward.5} parent=0 // pred_fallthru
    _

// kernel: forward.6
$region0: #{forward.6}
  #allocation0 [shape = 'u32[]', space=smem, size = 0x4, offset = 0x4, fixed_abs, tag = 'smem constant byte address 0x4 - core index']
  #allocation1 [shape = 'u32[72,128]{1,0:T(1,128)}', space=vmem, size = 0x9000, scoped, tag = 'internal scratch']
  %s0 = inlined_call_operand.vmem [shape: bf16[8,144], index: 0, kind: input, shape index: {}]
  %s1 = inlined_call_operand.vmem [shape: bf16[144,16], index: 1, kind: input, shape index: {}]
  %s2 = inlined_call_operand.vmem [shape: f32[1,16], index: 2, kind: input, shape index: {}]
  %s3 = inlined_call_operand.vmem [shape: bf16[8,16], index: 3, kind: output, shape index: {}]
  %s4 = sld [smem:[#allocation0]]
  $region22: #{forward.6} parent=0
    _
  %s6 = ssub.s32 1, %s4
  %s7 = scalar_select 0, %s6, %s4
  // Predicated region
  $region2: #{forward.6} parent=0 // pred_check
    _
  $region3: #{forward.6} parent=0 // pred_check_branch
    %9 = sbr.rel (0) target = $region5
  $region4: #{forward.6} parent=0 // pred_region
    _
  $region5: #{forward.6} parent=0 // pred_fallthru
    _
  // Predicated region
  $region6: #{forward.6} parent=0 // pred_check
    _
  $region7: #{forward.6} parent=0 // pred_check_branch
    %11 = sbr.rel (0) target = $region9
  $region8: #{forward.6} parent=0 // pred_region
    _
  $region9: #{forward.6} parent=0 // pred_fallthru
    _
  // Predicated region
  $region10: #{forward.6} parent=0 // pred_check
    _
  $region11: #{forward.6} parent=0 // pred_check_branch
    %13 = sbr.rel (0) target = $region13
  $region12: #{forward.6} parent=0 // pred_region
    _
  $region13: #{forward.6} parent=0 // pred_fallthru
    _
  %v15 = vld [vmem:[%s0] sm:$0xff]
  %v16 = vld [vmem:[%s1] sm:$0xf]
  %v17 = vld [vmem:[%s1 + $0x4] sm:$0xf]
  %v18 = vld [vmem:[%s1 + $0x8] sm:$0xf]
  %v19 = vld [vmem:[%s1 + $0xc] sm:$0xf]
  %v20 = vld [vmem:[%s1 + $0x10] sm:$0xf]
  %v21 = vld [vmem:[%s1 + $0x14] sm:$0xf]
  %v22 = vld [vmem:[%s1 + $0x18] sm:$0xf]
  %v23 = vld [vmem:[%s1 + $0x1c] sm:$0xf]
  %v24 = vld [vmem:[%s1 + $0x20] sm:$0xf]
  %v25 = vld [vmem:[%s1 + $0x24] sm:$0xf]
  %v26 = vld [vmem:[%s1 + $0x28] sm:$0xf]
  %v27 = vld [vmem:[%s1 + $0x2c] sm:$0xf]
  %v28 = vld [vmem:[%s1 + $0x30] sm:$0xf]
  %v29 = vld [vmem:[%s1 + $0x34] sm:$0xf]
  %v30 = vld [vmem:[%s1 + $0x38] sm:$0xf]
  %v31 = vld [vmem:[%s1 + $0x3c] sm:$0xf]
  %v32 = vld [vmem:[%s1 + $0x40] sm:$0xf]
  %v33 = vld [vmem:[%s1 + $0x44] sm:$0xf]
  %v34 = vld [vmem:[%s2] sm:$0x1]
  %v36 = vperm.slane %v34, 0
  %v39 = vunpack.c.l.b16 %v15
  %v40 = vunpack.c.h.b16 %v15
  %v41 = vpack.c.b16 %v39, %v39
  %v42 = vpack.c.b16 %v40, %v40
  %v62 = vunpack.c.l.b16 %v16
  %v63 = vunpack.c.l.b16 %v17
  %v64 = vunpack.c.l.b16 %v18
  %v65 = vunpack.c.l.b16 %v19
  %v66 = vunpack.c.l.b16 %v20
  %v67 = vunpack.c.l.b16 %v21
  %v68 = vunpack.c.l.b16 %v22
  %v69 = vunpack.c.l.b16 %v23
  %v70 = vunpack.c.l.b16 %v24
  %v71 = vunpack.c.l.b16 %v25
  %v72 = vunpack.c.l.b16 %v26
  %v73 = vunpack.c.l.b16 %v27
  %v74 = vunpack.c.l.b16 %v28
  %v75 = vunpack.c.l.b16 %v29
  %v76 = vunpack.c.l.b16 %v30
  %v77 = vunpack.c.l.b16 %v31
  %v78 = vunpack.c.l.b16 %v32
  %v79 = vunpack.c.l.b16 %v33
  %v80 = vpack.c.b16 %v63, %v62
  %v81 = vpack.c.b16 %v65, %v64
  %v82 = vpack.c.b16 %v67, %v66
  %v83 = vpack.c.b16 %v69, %v68
  %v84 = vpack.c.b16 %v71, %v70
  %v85 = vpack.c.b16 %v73, %v72
  %v86 = vpack.c.b16 %v75, %v74
  %v87 = vpack.c.b16 %v77, %v76
  %v88 = vpack.c.b16 %v79, %v78
  %vm98 = vcmask 130048
  %v100 = vsel %vm98, %v42, 0
  %102 = vmatpush.bf16.msra.mxu0 %v87
  %103 = vmatpush.bf16.msra.mxu0 %v86
  %104 = vmatpush.bf16.msra.mxu0 %v85
  %105 = vmatpush.bf16.msra.mxu0 %v84
  %106 = vmatpush.bf16.msra.mxu0 %v83
  %107 = vmatpush.bf16.msra.mxu0 %v82
  %108 = vmatpush.bf16.msra.mxu0 %v81
  %109 = vmatpush.bf16.msra.mxu0 %v80
  %110 = vmatmul.bf16.gmra.mxu0 %v41
  %v111 = vpop.f32.mrf.mxu0
  %v112 = vadd.f32 %v36, %v111
  %v113 = vpop.f32.mrf.mxu0
  %114 = vdwg.mxu0
  %115 = vmatpush.bf16.msra.mxu0 0
  %116 = vmatpush.bf16.msra.mxu0 0
  %117 = vmatpush.bf16.msra.mxu0 0
  %118 = vmatpush.bf16.msra.mxu0 0
  %119 = vmatpush.bf16.msra.mxu0 0
  %120 = vmatpush.bf16.msra.mxu0 0
  %121 = vmatpush.bf16.msra.mxu0 0
  %122 = vmatpush.bf16.msra.mxu0 %v88
  %123 = vmatmul.bf16.gmra.mxu0 %v100
  %v124 = vpop.f32.mrf.mxu0
  %v125 = vadd.f32 %v112, %v124
  %v126 = vpop.f32.mrf.mxu0
  %127 = vdwg.mxu0
  %v128 = vmax.f32 %v125, 0.0
  %v129 = vpack.c.bf16 %v128, %v128
  %vm130 = vcmask 125952
  %131 = vst.msk [vmem:[%s3] sm:$0xf] %vm130, %v129
  // Predicated region
  $region14: #{forward.6} parent=0 // pred_check
    _
  $region15: #{forward.6} parent=0 // pred_check_branch
    %133 = sbr.rel (0) target = $region17
  $region16: #{forward.6} parent=0 // pred_region
    _
  $region17: #{forward.6} parent=0 // pred_fallthru
    _
  // Predicated region
  $region18: #{forward.6} parent=0 // pred_check
    _
  $region19: #{forward.6} parent=0 // pred_check_branch
    %135 = sbr.rel (0) target = $region21
  $region20: #{forward.6} parent=0 // pred_region
    _
  $region21: #{forward.6} parent=0 // pred_fallthru
    _

// kernel: forward.7
$region0: #{forward.7}
  #allocation0 [shape = 'u32[]', space=smem, size = 0x4, offset = 0x4, fixed_abs, tag = 'smem constant byte address 0x4 - core index']
  #allocation1 [shape = 'u32[72,128]{1,0:T(1,128)}', space=vmem, size = 0x9000, scoped, tag = 'internal scratch']
  #allocation2 [shape = 'f32[1,1]{1,0:T(1,128)S(1)}', space=vmem, size = 0x200, scoped, tag = 'scoped memory for forward.7']
  %s0 = inlined_call_operand.vmem [shape: bf16[2,64], index: 0, kind: input, shape index: {}]
  %s1 = inlined_call_operand.vmem [shape: bf16[64,32], index: 1, kind: input, shape index: {}]
  %s2 = inlined_call_operand.vmem [shape: f32[1,32], index: 2, kind: input, shape index: {}]
  %s3 = inlined_call_operand.vmem [shape: bf16[32,6], index: 3, kind: input, shape index: {}]
  %s4 = inlined_call_operand.vmem [shape: f32[1,6], index: 4, kind: input, shape index: {}]
  %s5 = inlined_call_operand.vmem [shape: f32[1,32], index: 5, kind: input, shape index: {}]
  %s6 = inlined_call_operand.<no memory space> [shape: f32[1,1], index: 6, kind: input, shape index: {}]
  %s7 = inlined_call_operand.hbm [shape: f32[2,6], index: 7, kind: output, shape index: {0}]
  %s8 = inlined_call_operand.vmem [shape: f32[2,1], index: 8, kind: output, shape index: {1}]
  %9 = xla_tuple %s7, %s8
  %s10 = sld [smem:[#allocation0]]
  $region46: #{forward.7} parent=0
    _
  %s12 = ssub.s32 1, %s10
  %s13 = scalar_select 0, %s12, %s10
  %v14 = vstv %s6
  %15 = vst [vmem:[#allocation2] sm:$0x1] %v14
  $region1: #{forward.7} parent=0
    #allocation3 [shape = 'u8[1024]{0}', space=vmem, size = 0x400, scoped, tag = 'output window, operand 0, single buffered']
    #allocation4 [shape = 's32[1]{0}', space=sflag, size = 0x4, scoped, tag = 'scoped memory for forward.7']
    %16 = vsyncpa [#allocation4], 0
    // Predicated region
    $region2: #{forward.7} parent=1 // pred_check
      _
    $region3: #{forward.7} parent=1 // pred_check_branch
      %18 = sbr.rel (0) target = $region5
    $region4: #{forward.7} parent=1 // pred_region
      _
    $region5: #{forward.7} parent=1 // pred_fallthru
      _
    // Predicated region
    $region6: #{forward.7} parent=1 // pred_check
      _
    $region7: #{forward.7} parent=1 // pred_check_branch
      %20 = sbr.rel (0) target = $region9
    $region8: #{forward.7} parent=1 // pred_region
      _
    $region9: #{forward.7} parent=1 // pred_fallthru
      _
    // Predicated region
    $region10: #{forward.7} parent=1 // pred_check
      _
    $region11: #{forward.7} parent=1 // pred_check_branch
      %22 = sbr.rel (0) target = $region13
    $region12: #{forward.7} parent=1 // pred_region
      _
    $region13: #{forward.7} parent=1 // pred_fallthru
      _
    // Predicated region
    $region14: #{forward.7} parent=1 // pred_check
      _
    $region15: #{forward.7} parent=1 // pred_check_branch
      %24 = sbr.rel (0) target = $region17
    $region16: #{forward.7} parent=1 // pred_region
      _
    $region17: #{forward.7} parent=1 // pred_fallthru
      _
    // Predicated region
    $region18: #{forward.7} parent=1 // pred_check
      _
    $region19: #{forward.7} parent=1 // pred_check_branch
      %26 = sbr.rel (0) target = $region21
    $region20: #{forward.7} parent=1 // pred_region
      _
    $region21: #{forward.7} parent=1 // pred_fallthru
      _
    // Predicated region
    $region22: #{forward.7} parent=1 // pred_check
      _
    $region23: #{forward.7} parent=1 // pred_check_branch
      %28 = sbr.rel (0) target = $region25
    $region24: #{forward.7} parent=1 // pred_region
      _
    $region25: #{forward.7} parent=1 // pred_fallthru
      _
    // Predicated region
    $region26: #{forward.7} parent=1 // pred_check
      _
    $region27: #{forward.7} parent=1 // pred_check_branch
      %30 = sbr.rel (0) target = $region29
    $region28: #{forward.7} parent=1 // pred_region
      _
    $region29: #{forward.7} parent=1 // pred_fallthru
      _
    %v32 = vld [vmem:[%s0] sm:$0x1]
    %v33 = vld [vmem:[%s1] sm:$0xf]
    %v34 = vld [vmem:[%s1 + $0x4] sm:$0xf]
    %v35 = vld [vmem:[%s1 + $0x8] sm:$0xf]
    %v36 = vld [vmem:[%s1 + $0xc] sm:$0xf]
    %v37 = vld [vmem:[%s1 + $0x10] sm:$0xf]
    %v38 = vld [vmem:[%s1 + $0x14] sm:$0xf]
    %v39 = vld [vmem:[%s1 + $0x18] sm:$0xf]
    %v40 = vld [vmem:[%s1 + $0x1c] sm:$0xf]
    %v41 = vld [vmem:[%s2] sm:$0x1]
    %v43 = vperm.slane %v41, 0
    %v53 = vunpack.c.l.b16 %v33
    %v54 = vunpack.c.l.b16 %v34
    %v55 = vunpack.c.l.b16 %v35
    %v56 = vunpack.c.l.b16 %v36
    %v57 = vunpack.c.l.b16 %v37
    %v58 = vunpack.c.l.b16 %v38
    %v59 = vunpack.c.l.b16 %v39
    %v60 = vunpack.c.l.b16 %v40
    %v61 = vpack.c.b16 %v54, %v53
    %v62 = vpack.c.b16 %v56, %v55
    %v63 = vpack.c.b16 %v58, %v57
    %v64 = vpack.c.b16 %v60, %v59
    %vm69 = vcmask 523264
    %v71 = vsel %vm69, %v32, 0
    %73 = vmatpush.bf16.msra.mxu0 0
    %74 = vmatpush.bf16.msra.mxu0 0
    %75 = vmatpush.bf16.msra.mxu0 0
    %76 = vmatpush.bf16.msra.mxu0 0
    %77 = vmatpush.bf16.msra.mxu0 %v64
    %78 = vmatpush.bf16.msra.mxu0 %v63
    %79 = vmatpush.bf16.msra.mxu0 %v62
    %80 = vmatpush.bf16.msra.mxu0 %v61
    %81 = vmatmul.bf16.gmra.mxu0 %v71
    %v82 = vpop.f32.mrf.mxu0
    %v83 = vadd.f32 %v43, %v82
    %v84 = vpop.f32.mrf.mxu0
    %85 = vdwg.mxu0
    %v86 = vmax.f32 %v83, 0.0
    %v87 = vpack.c.bf16 %v86, %v86
    %v88 = vld [vmem:[%s3] sm:$0xf]
    %v89 = vld [vmem:[%s3 + $0x4] sm:$0xf]
    %v90 = vld [vmem:[%s3 + $0x8] sm:$0xf]
    %v91 = vld [vmem:[%s3 + $0xc] sm:$0xf]
    %v92 = vld [vmem:[%s4] sm:$0x1]
    %v94 = vperm.slane %v92, 0
    %v100 = vunpack.c.l.b16 %v88
    %v101 = vunpack.c.l.b16 %v89
    %v102 = vunpack.c.l.b16 %v90
    %v103 = vunpack.c.l.b16 %v91
    %v104 = vpack.c.b16 %v101, %v100
    %v105 = vpack.c.b16 %v103, %v102
    %vm108 = vcmask 261120
    %v110 = vsel %vm108, %v87, 0
    %112 = vmatpush.bf16.msra.mxu0 0
    %113 = vmatpush.bf16.msra.mxu0 0
    %114 = vmatpush.bf16.msra.mxu0 0
    %115 = vmatpush.bf16.msra.mxu0 0
    %116 = vmatpush.bf16.msra.mxu0 0
    %117 = vmatpush.bf16.msra.mxu0 0
    %118 = vmatpush.bf16.msra.mxu0 %v105
    %119 = vmatpush.bf16.msra.mxu0 %v104
    %120 = vmatmul.bf16.gmra.mxu0 %v110
    %v121 = vpop.f32.mrf.mxu0
    %v122 = vadd.f32 %v94, %v121
    %v123 = vpop.f32.mrf.mxu0
    %124 = vdwg.mxu0
    %vm125 = vcmask 41984
    %v126 = vsel %vm125, %v122, -inf
    %127 = vmax.xlane.f32.xlu0 %v126
    %v128 = vpop.xlane.xlu0 %127
    %v129 = vsub.f32 %v122, %v128
    %v130 = vmul.f32 %v129, 1.442695
    %v131 = vpow.pop %v130
    %v132 = vsel %vm125, %v131, 0.0
    %133 = vadd.xlane.f32.xlu0 %v132
    %v134 = vpop.xlane.xlu0 %133
    %v135 = vrcp.pop %v134
    %v136 = vmul.f32 %v131, %v135
    %137 = vst.msk [vmem:[#allocation3] sm:$0x3] %vm125, %v136
    %v138 = vld [vmem:[%s5] sm:$0x1]
    %v140 = vperm.slane %v138, 0
    %v142 = vmul.f32 %v86, %v140
    %vm143 = vcmask 254976
    %v144 = vsel %vm143, %v142, 0.0
    %145 = vadd.xlane.f32.xlu0 %v144
    %v146 = vpop.xlane.xlu0 %145
    %v147 = vld [vmem:[#allocation2] sm:$0x1]
    %v149 = vperm.slane %v147, 0
    %v151 = vadd.f32 %v146, %v149
    %vm152 = vcmask 1024
    %153 = vst.msk [vmem:[%s8] sm:$0x3] %vm152, %v151
    // Predicated region
    $region30: #{forward.7} parent=1 // pred_check
      _
    $region31: #{forward.7} parent=1 // pred_check_branch
      %155 = sbr.rel (0) target = $region33
    $region32: #{forward.7} parent=1 // pred_region
      %157 = vsyncadd [#allocation4], 0
      %s159 = sshll.u32 [#allocation3], 4
      %s160 = int_to_ptr.vmem [resolvable:$true] %s159
      %s161 = sshll.u32 %s7, 4
      %s162 = int_to_ptr.hbm [resolvable:$true] %s161
      %164 = dma.vmem_to_hbm [thread:$0]  %s160, 32, %s162, [#allocation4]
    $region33: #{forward.7} parent=1 // pred_fallthru
      _
    // Predicated region
    $region34: #{forward.7} parent=1 // pred_check
      _
    $region35: #{forward.7} parent=1 // pred_check_branch
      %166 = sbr.rel (0) target = $region37
    $region36: #{forward.7} parent=1 // pred_region
      _
    $region37: #{forward.7} parent=1 // pred_fallthru
      _
    // Predicated region
    $region38: #{forward.7} parent=1 // pred_check
      _
    $region39: #{forward.7} parent=1 // pred_check_branch
      %168 = sbr.rel (0) target = $region41
    $region40: #{forward.7} parent=1 // pred_region
      %170 = dma.done [#allocation4], 32
    $region41: #{forward.7} parent=1 // pred_fallthru
      _
    // Predicated region
    $region42: #{forward.7} parent=1 // pred_check
      _
    $region43: #{forward.7} parent=1 // pred_check_branch
      %172 = sbr.rel (0) target = $region45
    $region44: #{forward.7} parent=1 // pred_region
      _
    $region45: #{forward.7} parent=1 // pred_fallthru
      _
    %173 = vsyncpa [#allocation4], 1

</llo_original>
